<compile_context>
chip_gen: v5e
topology: v5e:2x2
jax: 0.10.0
libtpu: 0.0.40
codegen_flags: <defaults>
</compile_context>

<pallas_src>
import jax
import jax.numpy as jnp
from jax.experimental import pallas as pl
from jax.experimental.pallas import tpu as pltpu


def _one_encoder_kernel(x_ref, w1_ref, w2_ref, wh_ref, out_ref):
    """x = [s1 | s2 | a | r | 1] -> [mu | logvar | zero pad] (lane-dense)."""
    cdt = w1_ref.dtype                 # MXU operand dtype (f32 or bf16)
    n_h1 = w1_ref.shape[1]             # 2 * 128 (both state branches)
    n_in = x_ref.shape[1]              # 2S + A + 1 (+1 ones column)
    n_hid = w2_ref.shape[1]            # hidden_dim

    # NOTE: keep bias-add / ReLU in f32 (v5e VPU has no bf16 VALU); only the
    # MXU operands are cast to the compute dtype.
    x = x_ref[...].astype(cdt)

    # Layer 1: both state branches as one block-diagonal dot (bias via the
    # ones-column of x), ReLU in f32.  h = [relu(s1@W+b) | relu(s2@W+b)].
    h = jnp.maximum(
        jnp.dot(x, w1_ref[...], preferred_element_type=jnp.float32), 0.0)

    # cat_encoder layer 1 as a sum of two dots (no lane-axis concat):
    #   relu(h @ [w_sc; w_nc]  +  x @ [0; w_ac; w_rc; b_c1_eff])
    z = (jnp.dot(h.astype(cdt), w2_ref[0:n_h1, :],
                 preferred_element_type=jnp.float32)
         + jnp.dot(x, w2_ref[n_h1:n_h1 + n_in, :],
                   preferred_element_type=jnp.float32))
    h2 = jnp.maximum(z, 0.0)

    # cat layer 2 folded into the fused mu|logvar head; bias is the last
    # sublane row of the head slab.  Single lane-dense 128*k-wide store.
    out = (jnp.dot(h2.astype(cdt), wh_ref[0:n_hid, :],
                   preferred_element_type=jnp.float32)
           + wh_ref[n_hid:n_hid + 1, :].astype(jnp.float32))
    out_ref[...] = out.astype(out_ref.dtype)


def init_params(key, state_dim, n_actions, hidden_dim,
                action_emb=8, reward_emb=4):
    """Synthetic parameters matching the PyTorch module shapes.

    Each Linear(in, out) is stored as (W[in, out], b[1, out])."""
    cat_in = hidden_dim * 2 + action_emb + reward_emb  # n_agents = 1
    shapes = [
        (state_dim, 128), (128, hidden_dim),             # state_encoder
        (n_actions, action_emb),                         # action_encoder
        (1, reward_emb),                                 # reward_encoder
        (state_dim, 128), (128, hidden_dim),             # next_state_encoder
        (cat_in, hidden_dim), (hidden_dim, hidden_dim),  # cat_encoder
        (hidden_dim, state_dim),                         # mu
        (hidden_dim, state_dim),                         # logvar
    ]
    params = []
    for (fan_in, fan_out) in shapes:
        key, kw, kb = jax.random.split(key, 3)
        scale = 1.0 / jnp.sqrt(jnp.float32(fan_in))
        w = jax.random.uniform(kw, (fan_in, fan_out), jnp.float32, -scale, scale)
        b = jax.random.uniform(kb, (1, fan_out), jnp.float32, -scale, scale)
        params += [w, b]
    return params


def fuse_params(params, compute_dtype=jnp.float32):
    """Fold the PyTorch-shaped params into the 3-slab kernel layout."""
    (w_se1, b_se1, w_se2, b_se2, w_ae, b_ae, w_re, b_re,
     w_ne1, b_ne1, w_ne2, b_ne2, w_c1, b_c1, w_c2, b_c2,
     w_mu, b_mu, w_lv, b_lv) = params

    S = w_se1.shape[0]
    E1 = w_se1.shape[1]        # 128 per branch
    H = w_se2.shape[1]
    A = w_ae.shape[0]          # n_actions
    AE = w_ae.shape[1]         # 8
    RE = w_re.shape[1]         # 4
    n_in = 2 * S + A + 1 + 1   # [s1 | s2 | a | r | 1]
    n_h1 = 2 * E1

    # split cat-layer-1 rows by concat order [e_s | e_a | e_r | e_n]
    w_c1_s = w_c1[:H]
    w_c1_a = w_c1[H:H + AE]
    w_c1_r = w_c1[H + AE:H + AE + RE]
    w_c1_n = w_c1[H + AE + RE:]

    # --- layer 1: block-diagonal (s1 -> branch 1, s2 -> branch 2), biases on
    # the trailing ones-column row; a/r rows are zero.
    w1 = jnp.zeros((n_in, n_h1), jnp.float32)
    w1 = w1.at[:S, :E1].set(w_se1)
    w1 = w1.at[S:2 * S, E1:].set(w_ne1)
    w1 = w1.at[n_in - 1, :E1].set(b_se1[0])
    w1 = w1.at[n_in - 1, E1:].set(b_ne1[0])

    # --- cat layer 1:  z = h @ w2_h + x @ w2_x   (stacked into one slab)
    w2_h = jnp.concatenate([w_se2 @ w_c1_s, w_ne2 @ w_c1_n], axis=0)   # (256,H)
    b_c1_eff = (b_c1 + b_se2 @ w_c1_s + b_ne2 @ w_c1_n
                + b_ae @ w_c1_a + b_re @ w_c1_r)                        # (1,H)
    w2_x = jnp.zeros((n_in, H), jnp.float32)
    w2_x = w2_x.at[2 * S:2 * S + A].set(w_ae @ w_c1_a)
    w2_x = w2_x.at[2 * S + A].set((w_re @ w_c1_r)[0])
    w2_x = w2_x.at[n_in - 1].set(b_c1_eff[0])
    w2 = jnp.concatenate([w2_h, w2_x], axis=0)                          # (256+n_in, H)

    # --- cat layer 2 folded into the fused, lane-padded mu|logvar head
    out_pad = 128 * pl.cdiv(2 * S, 128)
    w_ml = jnp.concatenate([w_mu, w_lv], axis=1)                        # (H, 2S)
    b_ml = jnp.concatenate([b_mu, b_lv], axis=1)                        # (1, 2S)
    w_head = w_c2 @ w_ml                                                # (H, 2S)
    b_head = b_c2 @ w_ml + b_ml                                         # (1, 2S)
    wh = jnp.concatenate([w_head, b_head], axis=0)                      # (H+1, 2S)
    wh = jnp.pad(wh, ((0, 0), (0, out_pad - 2 * S)))

    cd = jnp.dtype(compute_dtype)
    return dict(w1=w1.astype(cd), w2=w2.astype(cd), wh=wh.astype(cd),
                S=S, H=H, A=A, n_in=n_in, n_h1=n_h1, out_pad=out_pad,
                compute_dtype=cd)


def _num_tensorcores():
    """Best-effort TC-per-device count: grid 'parallel' splits only pay off on
    chips exposing >1 TensorCore per device (v4/v5p megacore, v7x)."""
    try:
        kind = jax.devices()[0].device_kind.lower()
    except Exception:
        return 1
    for tag in ("v4", "v5p", "7x", "v7"):
        if tag in kind:
            return 2
    return 1


def _auto_tile(B, n_in, n_h1, H, out_pad, *, vmem_budget=12 << 20,
               min_rows_per_core=512):
    """Pick a batch tile: single grid step unless (a) the device has >1 TC and
    each half is fat enough, or (b) the VMEM-derived cap forces a split."""
    per_row = ((n_in + n_h1 + H + out_pad) * 4          # f32 intermediates
               + 2 * n_in * 4 + 2 * out_pad * 4)        # double-buffered in/out
    max_tb = max(8, (vmem_budget // per_row) // 8 * 8)  # ~4k rows in <12 MiB

    tb = B
    if _num_tensorcores() > 1 and B % 16 == 0 and B // 2 >= min_rows_per_core:
        tb = B // 2          # 2-way TensorCore split only when each half is fat
    while tb > max_tb and tb % 2 == 0 and (tb // 2) % 8 == 0:
        tb //= 2
    return tb


def one_encoder_forward(s_t_1, a, r, s_t_2, fused, *, tb=None,
                        out_dtype=jnp.float32):
    """fused: output of fuse_params(). Returns (mu, logvar)."""
    B, S = s_t_1.shape
    assert S == fused["S"]
    H, n_in, n_h1, out_pad = (fused["H"], fused["n_in"], fused["n_h1"],
                              fused["out_pad"])
    w1, w2, wh = fused["w1"], fused["w2"], fused["wh"]

    # single packed f32 input slab: [s1 | s2 | a | r | 1]
    # (kept f32 at the call boundary; the kernel casts MXU operands itself)
    ones = jnp.ones((B, 1), jnp.float32)
    x = jnp.concatenate([s_t_1, s_t_2, a, r, ones], axis=-1).astype(jnp.float32)
    assert x.shape[1] == n_in

    if tb is None:
        tb = _auto_tile(B, n_in, n_h1, H, out_pad)
    assert B % tb == 0, "batch must be divisible by the batch tile"
    assert tb == B or tb % 8 == 0, "batch tile must be 8-aligned or the full batch"
    if jnp.dtype(out_dtype).itemsize == 2:
        assert tb == B or tb % 16 == 0, "16-aligned tile needed for 16-bit output"
    grid = (B // tb,)

    in_specs = [
        pl.BlockSpec((tb, n_in), lambda i: (i, 0)),      # batch-tiled input slab
        pl.BlockSpec(w1.shape, lambda i: (0, 0)),        # constant weight slabs
        pl.BlockSpec(w2.shape, lambda i: (0, 0)),
        pl.BlockSpec(wh.shape, lambda i: (0, 0)),
    ]
    out_specs = pl.BlockSpec((tb, out_pad), lambda i: (i, 0))
    out_shape = jax.ShapeDtypeStruct((B, out_pad), out_dtype)

    # advisory cost estimate so XLA schedules this tiny call sensibly
    flops = 2 * B * (n_in * n_h1 + n_h1 * H + n_in * H + H * out_pad)
    bytes_accessed = (x.size * 4
                      + sum(p.size * p.dtype.itemsize for p in (w1, w2, wh))
                      + B * out_pad * jnp.dtype(out_dtype).itemsize)
    cost = pl.CostEstimate(flops=int(flops), transcendentals=0,
                           bytes_accessed=int(bytes_accessed))

    out = pl.pallas_call(
        _one_encoder_kernel,
        grid=grid,
        in_specs=in_specs,
        out_specs=out_specs,
        out_shape=out_shape,
        compiler_params=pltpu.CompilerParams(
            dimension_semantics=("parallel",)),
        cost_estimate=cost,
    )(x, w1, w2, wh)

    return out[:, :S], out[:, S:2 * S]


def reference_forward(s1, a, r, s2, params):
    """Pure-JAX reference with the original (unfused) module semantics."""
    (w_se1, b_se1, w_se2, b_se2, w_ae, b_ae, w_re, b_re,
     w_ne1, b_ne1, w_ne2, b_ne2, w_c1, b_c1, w_c2, b_c2,
     w_mu, b_mu, w_lv, b_lv) = params
    h_s = jnp.maximum(s1 @ w_se1 + b_se1, 0.0) @ w_se2 + b_se2
    h_a = a @ w_ae + b_ae
    h_r = r @ w_re + b_re
    h_n = jnp.maximum(s2 @ w_ne1 + b_ne1, 0.0) @ w_ne2 + b_ne2
    cat = jnp.concatenate([h_s, h_a, h_r, h_n], axis=-1)
    h = jnp.maximum(cat @ w_c1 + b_c1, 0.0) @ w_c2 + b_c2
    return h @ w_mu + b_mu, h @ w_lv + b_lv


if __name__ == "__main__":
    # Config consistent with the module:
    #   latent_dim=16, n_agents=1 -> state_input_dim = 16
    #   n_actions=6, hidden_dim=32
    LATENT_DIM, N_AGENTS, N_ACTIONS, HIDDEN = 16, 1, 6, 32
    STATE_DIM = LATENT_DIM * N_AGENTS
    B = 128  # small batch -> single grid step on every generation

    key = jax.random.PRNGKey(0)
    kp, k1, k2, k3, k4 = jax.random.split(key, 5)

    params = init_params(kp, STATE_DIM, N_ACTIONS, HIDDEN)

    s_t_1 = jax.random.normal(k1, (B, STATE_DIM), jnp.float32)
    a = jax.random.normal(k2, (B, N_ACTIONS), jnp.float32)
    r = jax.random.normal(k3, (B, 1), jnp.float32)
    s_t_2 = jax.random.normal(k4, (B, STATE_DIM), jnp.float32)

    mu_ref, lv_ref = reference_forward(s_t_1, a, r, s_t_2, params)

    # float32 path (tight check)
    fused_f32 = fuse_params(params, jnp.float32)
    mu, logvar = one_encoder_forward(s_t_1, a, r, s_t_2, fused_f32)
    jax.block_until_ready((mu, logvar))
    assert jnp.allclose(mu, mu_ref, atol=1e-4, rtol=1e-4)
    assert jnp.allclose(logvar, lv_ref, atol=1e-4, rtol=1e-4)

    # bf16 weights on the MXU, f32 accumulate / elementwise (v5e-friendly path)
    fused_bf16 = fuse_params(params, jnp.bfloat16)
    mu_b, lv_b = one_encoder_forward(s_t_1, a, r, s_t_2, fused_bf16)
    jax.block_until_ready((mu_b, lv_b))
    assert jnp.allclose(mu_b, mu_ref, atol=1e-1, rtol=1e-1)
    assert jnp.allclose(lv_b, lv_ref, atol=1e-1, rtol=1e-1)

    print("KERNEL_OK")
</pallas_src>

<mosaic_0001>
module attributes {stable_mosaic.version = 11 : i64} {
  func.func @_one_encoder_kernel(%arg0: i32, %arg1: memref<128x40xf32, #tpu.memory_space<vmem>>, %arg2: memref<40x256xf32, #tpu.memory_space<vmem>>, %arg3: memref<296x32xf32, #tpu.memory_space<vmem>>, %arg4: memref<33x128xf32, #tpu.memory_space<vmem>>, %arg5: memref<128x128xf32, #tpu.memory_space<vmem>>) attributes {dimension_semantics = [#tpu.dimension_semantics<parallel>], iteration_bounds = array<i64: 1>, scalar_prefetch = 0 : i64, scratch_operands = 0 : i64, tpu.core_type = #tpu.core_type<tc>, window_params = [{transform_indices = @transform_0, window_bounds = array<i64: 128, 40>}, {pipeline_mode = #tpu.pipeline_mode<synchronous>, transform_indices = @transform_1, window_bounds = array<i64: 40, 256>}, {pipeline_mode = #tpu.pipeline_mode<synchronous>, transform_indices = @transform_2, window_bounds = array<i64: 296, 32>}, {pipeline_mode = #tpu.pipeline_mode<synchronous>, transform_indices = @transform_3, window_bounds = array<i64: 33, 128>}, {transform_indices = @transform_4, window_bounds = array<i64: 128, 128>}]} {
    %c0 = arith.constant 0 : index
    %c0_0 = arith.constant 0 : index
    %0 = vector.load %arg1[%c0, %c0_0] : memref<128x40xf32, #tpu.memory_space<vmem>>, vector<128x40xf32>
    %c0_1 = arith.constant 0 : index
    %c0_2 = arith.constant 0 : index
    %1 = vector.load %arg2[%c0_1, %c0_2] : memref<40x256xf32, #tpu.memory_space<vmem>>, vector<40x256xf32>
    %cst = arith.constant dense<0.000000e+00> : vector<128x256xf32>
    %2 = tpu.matmul %0, %1, %cst {dimension_numbers = #tpu.dot_dimension_numbers<[1], [0], [0], [1], [0, 0, 1, 1], [], []>} : vector<128x40xf32>, vector<40x256xf32>, vector<128x256xf32> -> vector<128x256xf32>
    %cst_3 = arith.constant 0.000000e+00 : f32
    %3 = vector.broadcast %cst_3 : f32 to vector<128x256xf32>
    %4 = arith.maximumf %2, %3 : vector<128x256xf32>
    %c0_4 = arith.constant 0 : index
    %c0_5 = arith.constant 0 : index
    %5 = vector.load %arg3[%c0_4, %c0_5] : memref<296x32xf32, #tpu.memory_space<vmem>>, vector<256x32xf32>
    %cst_6 = arith.constant dense<0.000000e+00> : vector<128x32xf32>
    %6 = tpu.matmul %4, %5, %cst_6 {dimension_numbers = #tpu.dot_dimension_numbers<[1], [0], [0], [1], [0, 0, 1, 1], [], []>} : vector<128x256xf32>, vector<256x32xf32>, vector<128x32xf32> -> vector<128x32xf32>
    %c256 = arith.constant 256 : index
    %c0_7 = arith.constant 0 : index
    %7 = vector.load %arg3[%c256, %c0_7] : memref<296x32xf32, #tpu.memory_space<vmem>>, vector<40x32xf32>
    %cst_8 = arith.constant dense<0.000000e+00> : vector<128x32xf32>
    %8 = tpu.matmul %0, %7, %cst_8 {dimension_numbers = #tpu.dot_dimension_numbers<[1], [0], [0], [1], [0, 0, 1, 1], [], []>} : vector<128x40xf32>, vector<40x32xf32>, vector<128x32xf32> -> vector<128x32xf32>
    %9 = arith.addf %6, %8 : vector<128x32xf32>
    %cst_9 = arith.constant 0.000000e+00 : f32
    %10 = vector.broadcast %cst_9 : f32 to vector<128x32xf32>
    %11 = arith.maximumf %9, %10 : vector<128x32xf32>
    %c0_10 = arith.constant 0 : index
    %c0_11 = arith.constant 0 : index
    %12 = vector.load %arg4[%c0_10, %c0_11] : memref<33x128xf32, #tpu.memory_space<vmem>>, vector<32x128xf32>
    %cst_12 = arith.constant dense<0.000000e+00> : vector<128x128xf32>
    %13 = tpu.matmul %11, %12, %cst_12 {dimension_numbers = #tpu.dot_dimension_numbers<[1], [0], [0], [1], [0, 0, 1, 1], [], []>} : vector<128x32xf32>, vector<32x128xf32>, vector<128x128xf32> -> vector<128x128xf32>
    %c32 = arith.constant 32 : index
    %c0_13 = arith.constant 0 : index
    %14 = vector.load %arg4[%c32, %c0_13] : memref<33x128xf32, #tpu.memory_space<vmem>>, vector<1x128xf32>
    %15 = vector.broadcast %14 : vector<1x128xf32> to vector<128x128xf32>
    %16 = arith.addf %13, %15 : vector<128x128xf32>
    %c0_14 = arith.constant 0 : index
    %c0_15 = arith.constant 0 : index
    %17 = vector.load %arg5[%c0_14, %c0_15] : memref<128x128xf32, #tpu.memory_space<vmem>>, vector<128x128xf32>
    tpu.vector_store %arg5[%c0_14, %c0_15], %16 {strides = array<i32>} : memref<128x128xf32, #tpu.memory_space<vmem>>, vector<128x128xf32>,
    return
  }
  func.func @transform_0(%arg0: i32) -> (i32, i32) {
    %c0_i32 = arith.constant 0 : i32
    %c0_i32_0 = arith.constant 0 : i32
    return %arg0, %c0_i32 : i32, i32
  }
  func.func @transform_1(%arg0: i32) -> (i32, i32) {
    %c0_i32 = arith.constant 0 : i32
    %c0_i32_0 = arith.constant 0 : i32
    %c0_i32_1 = arith.constant 0 : i32
    return %c0_i32, %c0_i32_0 : i32, i32
  }
  func.func @transform_2(%arg0: i32) -> (i32, i32) {
    %c0_i32 = arith.constant 0 : i32
    %c0_i32_0 = arith.constant 0 : i32
    %c0_i32_1 = arith.constant 0 : i32
    return %c0_i32, %c0_i32_0 : i32, i32
  }
  func.func @transform_3(%arg0: i32) -> (i32, i32) {
    %c0_i32 = arith.constant 0 : i32
    %c0_i32_0 = arith.constant 0 : i32
    %c0_i32_1 = arith.constant 0 : i32
    return %c0_i32, %c0_i32_0 : i32, i32
  }
  func.func @transform_4(%arg0: i32) -> (i32, i32) {
    %c0_i32 = arith.constant 0 : i32
    %c0_i32_0 = arith.constant 0 : i32
    return %arg0, %c0_i32 : i32, i32
  }
}

</mosaic_0001>

<llo_original>
// kernel: tpu_custom_call.1
$region0: #{tpu_custom_call.1}
  #allocation0 [shape = 'u32[]', space=smem, size = 0x4, offset = 0x4, fixed_abs, tag = 'smem constant byte address 0x4 - core index']
  #allocation1 [shape = 'u32[72,128]{1,0:T(1,128)}', space=vmem, size = 0x9000, scoped, tag = 'internal scratch']
  %s0 = inlined_call_operand.vmem [shape: f32[128,40], index: 0, kind: input, shape index: {}]
  %s1 = inlined_call_operand.vmem [shape: f32[40,256], index: 1, kind: input, shape index: {}]
  %s2 = inlined_call_operand.vmem [shape: f32[296,32], index: 2, kind: input, shape index: {}]
  %s3 = inlined_call_operand.vmem [shape: f32[33,128], index: 3, kind: input, shape index: {}]
  %s4 = inlined_call_operand.hbm [shape: f32[128,128], index: 4, kind: output, shape index: {}]
  %s5 = sld [smem:[#allocation0]]
  $region26: #{tpu_custom_call.1} parent=0
    _
  %s7 = ssub.s32 1, %s5
  %s8 = scalar_select 0, %s7, %s5
  $region1: #{tpu_custom_call.1} parent=0
    #allocation2 [shape = 'u8[65536]{0}', space=vmem, size = 0x10000, scoped, tag = 'output window, operand 0, single buffered']
    #allocation3 [shape = 's32[1]{0}', space=sflag, size = 0x4, scoped, tag = 'scoped memory for tpu_custom_call.1']
    %9 = vsyncpa [#allocation3], 0
    // Predicated region
    $region2: #{tpu_custom_call.1} parent=1 // pred_check
      _
    $region3: #{tpu_custom_call.1} parent=1 // pred_check_branch
      %11 = sbr.rel (0) target = $region5
    $region4: #{tpu_custom_call.1} parent=1 // pred_region
      _
    $region5: #{tpu_custom_call.1} parent=1 // pred_fallthru
      _
    // Predicated region
    $region6: #{tpu_custom_call.1} parent=1 // pred_check
      _
    $region7: #{tpu_custom_call.1} parent=1 // pred_check_branch
      %13 = sbr.rel (0) target = $region9
    $region8: #{tpu_custom_call.1} parent=1 // pred_region
      _
    $region9: #{tpu_custom_call.1} parent=1 // pred_fallthru
      _
    // Predicated region
    $region10: #{tpu_custom_call.1} parent=1 // pred_check
      _
    $region11: #{tpu_custom_call.1} parent=1 // pred_check_branch
      %15 = sbr.rel (0) target = $region13
    $region12: #{tpu_custom_call.1} parent=1 // pred_region
      _
    $region13: #{tpu_custom_call.1} parent=1 // pred_fallthru
      _
    // Predicated region
    $region14: #{tpu_custom_call.1} parent=1 // pred_check
      _
    $region15: #{tpu_custom_call.1} parent=1 // pred_check_branch
      %17 = sbr.rel (0) target = $region17
    $region16: #{tpu_custom_call.1} parent=1 // pred_region
      _
    $region17: #{tpu_custom_call.1} parent=1 // pred_fallthru
      _
    %v18 = vld [vmem:[%s0] sm:$0xff]
    %v19 = vld [vmem:[%s0 + $0x8] sm:$0xff]
    %v20 = vld [vmem:[%s0 + $0x10] sm:$0xff]
    %v21 = vld [vmem:[%s0 + $0x18] sm:$0xff]
    %v22 = vld [vmem:[%s0 + $0x20] sm:$0xff]
    %v23 = vld [vmem:[%s0 + $0x28] sm:$0xff]
    %v24 = vld [vmem:[%s0 + $0x30] sm:$0xff]
    %v25 = vld [vmem:[%s0 + $0x38] sm:$0xff]
    %v26 = vld [vmem:[%s0 + $0x40] sm:$0xff]
    %v27 = vld [vmem:[%s0 + $0x48] sm:$0xff]
    %v28 = vld [vmem:[%s0 + $0x50] sm:$0xff]
    %v29 = vld [vmem:[%s0 + $0x58] sm:$0xff]
    %v30 = vld [vmem:[%s0 + $0x60] sm:$0xff]
    %v31 = vld [vmem:[%s0 + $0x68] sm:$0xff]
    %v32 = vld [vmem:[%s0 + $0x70] sm:$0xff]
    %v33 = vld [vmem:[%s0 + $0x78] sm:$0xff]
    %v34 = vld [vmem:[%s1] sm:$0xff]
    %v35 = vld [vmem:[%s1 + $0x8] sm:$0xff]
    %v36 = vld [vmem:[%s1 + $0x10] sm:$0xff]
    %v37 = vld [vmem:[%s1 + $0x18] sm:$0xff]
    %v38 = vld [vmem:[%s1 + $0x20] sm:$0xff]
    %v39 = vld [vmem:[%s1 + $0x28] sm:$0xff]
    %v40 = vld [vmem:[%s1 + $0x30] sm:$0xff]
    %v41 = vld [vmem:[%s1 + $0x38] sm:$0xff]
    %v42 = vld [vmem:[%s1 + $0x40] sm:$0xff]
    %v43 = vld [vmem:[%s1 + $0x48] sm:$0xff]
    %vm44 = vcmask 326656
    %v46 = vsel %vm44, %v18, 0
    %v49 = vsel %vm44, %v19, 0
    %v52 = vsel %vm44, %v20, 0
    %v55 = vsel %vm44, %v21, 0
    %v58 = vsel %vm44, %v22, 0
    %v61 = vsel %vm44, %v23, 0
    %v64 = vsel %vm44, %v24, 0
    %v67 = vsel %vm44, %v25, 0
    %v70 = vsel %vm44, %v26, 0
    %v73 = vsel %vm44, %v27, 0
    %v76 = vsel %vm44, %v28, 0
    %v79 = vsel %vm44, %v29, 0
    %v82 = vsel %vm44, %v30, 0
    %v85 = vsel %vm44, %v31, 0
    %v88 = vsel %vm44, %v32, 0
    %v91 = vsel %vm44, %v33, 0
    %93 = vmatpush.msra.mxu0 0.0
    %94 = vmatpush.msra.mxu0 0.0
    %95 = vmatpush.msra.mxu0 0.0
    %96 = vmatpush.msra.mxu0 0.0
    %97 = vmatpush.msra.mxu0 0.0
    %98 = vmatpush.msra.mxu0 0.0
    %99 = vmatpush.msra.mxu0 0.0
    %100 = vmatpush.msra.mxu0 0.0
    %101 = vmatpush.msra.mxu0 0.0
    %102 = vmatpush.msra.mxu0 0.0
    %103 = vmatpush.msra.mxu0 0.0
    %104 = vmatpush.msra.mxu0 %v42
    %105 = vmatpush.msra.mxu0 %v40
    %106 = vmatpush.msra.mxu0 %v38
    %107 = vmatpush.msra.mxu0 %v36
    %108 = vmatpush.msra.mxu0 %v34
    %109 = vmatmul.f32.gmra.mxu0 %v46
    %v110 = vpop.f32.mrf.mxu0
    %v111 = vadd.f32 0.0, %v110
    %112 = vmatmul.f32.gmra.mxu0 %v49
    %v113 = vpop.f32.mrf.mxu0
    %v114 = vadd.f32 0.0, %v113
    %115 = vmatmul.f32.gmra.mxu0 %v52
    %v116 = vpop.f32.mrf.mxu0
    %v117 = vadd.f32 0.0, %v116
    %118 = vmatmul.f32.gmra.mxu0 %v55
    %v119 = vpop.f32.mrf.mxu0
    %v120 = vadd.f32 0.0, %v119
    %121 = vmatmul.f32.gmra.mxu0 %v58
    %v122 = vpop.f32.mrf.mxu0
    %v123 = vadd.f32 0.0, %v122
    %124 = vmatmul.f32.gmra.mxu0 %v61
    %v125 = vpop.f32.mrf.mxu0
    %v126 = vadd.f32 0.0, %v125
    %127 = vmatmul.f32.gmra.mxu0 %v64
    %v128 = vpop.f32.mrf.mxu0
    %v129 = vadd.f32 0.0, %v128
    %130 = vmatmul.f32.gmra.mxu0 %v67
    %v131 = vpop.f32.mrf.mxu0
    %v132 = vadd.f32 0.0, %v131
    %133 = vmatmul.f32.gmra.mxu0 %v70
    %v134 = vpop.f32.mrf.mxu0
    %v135 = vadd.f32 0.0, %v134
    %136 = vmatmul.f32.gmra.mxu0 %v73
    %v137 = vpop.f32.mrf.mxu0
    %v138 = vadd.f32 0.0, %v137
    %139 = vmatmul.f32.gmra.mxu0 %v76
    %v140 = vpop.f32.mrf.mxu0
    %v141 = vadd.f32 0.0, %v140
    %142 = vmatmul.f32.gmra.mxu0 %v79
    %v143 = vpop.f32.mrf.mxu0
    %v144 = vadd.f32 0.0, %v143
    %145 = vmatmul.f32.gmra.mxu0 %v82
    %v146 = vpop.f32.mrf.mxu0
    %v147 = vadd.f32 0.0, %v146
    %148 = vmatmul.f32.gmra.mxu0 %v85
    %v149 = vpop.f32.mrf.mxu0
    %v150 = vadd.f32 0.0, %v149
    %151 = vmatmul.f32.gmra.mxu0 %v88
    %v152 = vpop.f32.mrf.mxu0
    %v153 = vadd.f32 0.0, %v152
    %154 = vmatmul.f32.gmra.mxu0 %v91
    %v155 = vpop.f32.mrf.mxu0
    %v156 = vadd.f32 0.0, %v155
    %157 = vdwg.mxu0
    %158 = vmatpush.msra.mxu0 0.0
    %159 = vmatpush.msra.mxu0 0.0
    %160 = vmatpush.msra.mxu0 0.0
    %161 = vmatpush.msra.mxu0 0.0
    %162 = vmatpush.msra.mxu0 0.0
    %163 = vmatpush.msra.mxu0 0.0
    %164 = vmatpush.msra.mxu0 0.0
    %165 = vmatpush.msra.mxu0 0.0
    %166 = vmatpush.msra.mxu0 0.0
    %167 = vmatpush.msra.mxu0 0.0
    %168 = vmatpush.msra.mxu0 0.0
    %169 = vmatpush.msra.mxu0 %v43
    %170 = vmatpush.msra.mxu0 %v41
    %171 = vmatpush.msra.mxu0 %v39
    %172 = vmatpush.msra.mxu0 %v37
    %173 = vmatpush.msra.mxu0 %v35
    %174 = vmatmul.f32.gmra.mxu0 %v46
    %v175 = vpop.f32.mrf.mxu0
    %v176 = vadd.f32 0.0, %v175
    %177 = vmatmul.f32.gmra.mxu0 %v49
    %v178 = vpop.f32.mrf.mxu0
    %v179 = vadd.f32 0.0, %v178
    %180 = vmatmul.f32.gmra.mxu0 %v52
    %v181 = vpop.f32.mrf.mxu0
    %v182 = vadd.f32 0.0, %v181
    %183 = vmatmul.f32.gmra.mxu0 %v55
    %v184 = vpop.f32.mrf.mxu0
    %v185 = vadd.f32 0.0, %v184
    %186 = vmatmul.f32.gmra.mxu0 %v58
    %v187 = vpop.f32.mrf.mxu0
    %v188 = vadd.f32 0.0, %v187
    %189 = vmatmul.f32.gmra.mxu0 %v61
    %v190 = vpop.f32.mrf.mxu0
    %v191 = vadd.f32 0.0, %v190
    %192 = vmatmul.f32.gmra.mxu0 %v64
    %v193 = vpop.f32.mrf.mxu0
    %v194 = vadd.f32 0.0, %v193
    %195 = vmatmul.f32.gmra.mxu0 %v67
    %v196 = vpop.f32.mrf.mxu0
    %v197 = vadd.f32 0.0, %v196
    %198 = vmatmul.f32.gmra.mxu0 %v70
    %v199 = vpop.f32.mrf.mxu0
    %v200 = vadd.f32 0.0, %v199
    %201 = vmatmul.f32.gmra.mxu0 %v73
    %v202 = vpop.f32.mrf.mxu0
    %v203 = vadd.f32 0.0, %v202
    %204 = vmatmul.f32.gmra.mxu0 %v76
    %v205 = vpop.f32.mrf.mxu0
    %v206 = vadd.f32 0.0, %v205
    %207 = vmatmul.f32.gmra.mxu0 %v79
    %v208 = vpop.f32.mrf.mxu0
    %v209 = vadd.f32 0.0, %v208
    %210 = vmatmul.f32.gmra.mxu0 %v82
    %v211 = vpop.f32.mrf.mxu0
    %v212 = vadd.f32 0.0, %v211
    %213 = vmatmul.f32.gmra.mxu0 %v85
    %v214 = vpop.f32.mrf.mxu0
    %v215 = vadd.f32 0.0, %v214
    %216 = vmatmul.f32.gmra.mxu0 %v88
    %v217 = vpop.f32.mrf.mxu0
    %v218 = vadd.f32 0.0, %v217
    %219 = vmatmul.f32.gmra.mxu0 %v91
    %v220 = vpop.f32.mrf.mxu0
    %v221 = vadd.f32 0.0, %v220
    %222 = vdwg.mxu0
    %v223 = vmax.f32 %v111, 0.0
    %v224 = vmax.f32 %v176, 0.0
    %v225 = vmax.f32 %v114, 0.0
    %v226 = vmax.f32 %v179, 0.0
    %v227 = vmax.f32 %v117, 0.0
    %v228 = vmax.f32 %v182, 0.0
    %v229 = vmax.f32 %v120, 0.0
    %v230 = vmax.f32 %v185, 0.0
    %v231 = vmax.f32 %v123, 0.0
    %v232 = vmax.f32 %v188, 0.0
    %v233 = vmax.f32 %v126, 0.0
    %v234 = vmax.f32 %v191, 0.0
    %v235 = vmax.f32 %v129, 0.0
    %v236 = vmax.f32 %v194, 0.0
    %v237 = vmax.f32 %v132, 0.0
    %v238 = vmax.f32 %v197, 0.0
    %v239 = vmax.f32 %v135, 0.0
    %v240 = vmax.f32 %v200, 0.0
    %v241 = vmax.f32 %v138, 0.0
    %v242 = vmax.f32 %v203, 0.0
    %v243 = vmax.f32 %v141, 0.0
    %v244 = vmax.f32 %v206, 0.0
    %v245 = vmax.f32 %v144, 0.0
    %v246 = vmax.f32 %v209, 0.0
    %v247 = vmax.f32 %v147, 0.0
    %v248 = vmax.f32 %v212, 0.0
    %v249 = vmax.f32 %v150, 0.0
    %v250 = vmax.f32 %v215, 0.0
    %v251 = vmax.f32 %v153, 0.0
    %v252 = vmax.f32 %v218, 0.0
    %v253 = vmax.f32 %v156, 0.0
    %v254 = vmax.f32 %v221, 0.0
    %v255 = vld [vmem:[%s2] sm:$0xff]
    %v256 = vld [vmem:[%s2 + $0x8] sm:$0xff]
    %v257 = vld [vmem:[%s2 + $0x10] sm:$0xff]
    %v258 = vld [vmem:[%s2 + $0x18] sm:$0xff]
    %v259 = vld [vmem:[%s2 + $0x20] sm:$0xff]
    %v260 = vld [vmem:[%s2 + $0x28] sm:$0xff]
    %v261 = vld [vmem:[%s2 + $0x30] sm:$0xff]
    %v262 = vld [vmem:[%s2 + $0x38] sm:$0xff]
    %v263 = vld [vmem:[%s2 + $0x40] sm:$0xff]
    %v264 = vld [vmem:[%s2 + $0x48] sm:$0xff]
    %v265 = vld [vmem:[%s2 + $0x50] sm:$0xff]
    %v266 = vld [vmem:[%s2 + $0x58] sm:$0xff]
    %v267 = vld [vmem:[%s2 + $0x60] sm:$0xff]
    %v268 = vld [vmem:[%s2 + $0x68] sm:$0xff]
    %v269 = vld [vmem:[%s2 + $0x70] sm:$0xff]
    %v270 = vld [vmem:[%s2 + $0x78] sm:$0xff]
    %v271 = vld [vmem:[%s2 + $0x80] sm:$0xff]
    %v272 = vld [vmem:[%s2 + $0x88] sm:$0xff]
    %v273 = vld [vmem:[%s2 + $0x90] sm:$0xff]
    %v274 = vld [vmem:[%s2 + $0x98] sm:$0xff]
    %v275 = vld [vmem:[%s2 + $0xa0] sm:$0xff]
    %v276 = vld [vmem:[%s2 + $0xa8] sm:$0xff]
    %v277 = vld [vmem:[%s2 + $0xb0] sm:$0xff]
    %v278 = vld [vmem:[%s2 + $0xb8] sm:$0xff]
    %v279 = vld [vmem:[%s2 + $0xc0] sm:$0xff]
    %v280 = vld [vmem:[%s2 + $0xc8] sm:$0xff]
    %v281 = vld [vmem:[%s2 + $0xd0] sm:$0xff]
    %v282 = vld [vmem:[%s2 + $0xd8] sm:$0xff]
    %v283 = vld [vmem:[%s2 + $0xe0] sm:$0xff]
    %v284 = vld [vmem:[%s2 + $0xe8] sm:$0xff]
    %v285 = vld [vmem:[%s2 + $0xf0] sm:$0xff]
    %v286 = vld [vmem:[%s2 + $0xf8] sm:$0xff]
    %v287 = vld [vmem:[%s2 + $0x100] sm:$0xff]
    %v288 = vld [vmem:[%s2 + $0x108] sm:$0xff]
    %v289 = vld [vmem:[%s2 + $0x110] sm:$0xff]
    %v290 = vld [vmem:[%s2 + $0x118] sm:$0xff]
    %v291 = vld [vmem:[%s2 + $0x120] sm:$0xff]
    %292 = vmatpush.msra.mxu0 0.0
    %293 = vmatpush.msra.mxu0 0.0
    %294 = vmatpush.msra.mxu0 0.0
    %295 = vmatpush.msra.mxu0 0.0
    %296 = vmatpush.msra.mxu0 0.0
    %297 = vmatpush.msra.mxu0 0.0
    %298 = vmatpush.msra.mxu0 0.0
    %299 = vmatpush.msra.mxu0 0.0
    %300 = vmatpush.msra.mxu0 0.0
    %301 = vmatpush.msra.mxu0 0.0
    %302 = vmatpush.msra.mxu0 0.0
    %303 = vmatpush.msra.mxu0 %v291
    %304 = vmatpush.msra.mxu0 %v290
    %305 = vmatpush.msra.mxu0 %v289
    %306 = vmatpush.msra.mxu0 %v288
    %307 = vmatpush.msra.mxu0 %v287
    %308 = vmatmul.f32.gmra.mxu0 %v46
    %v309 = vpop.f32.mrf.mxu0
    %v310 = vadd.f32 0.0, %v309
    %311 = vmatmul.f32.gmra.mxu0 %v49
    %v312 = vpop.f32.mrf.mxu0
    %v313 = vadd.f32 0.0, %v312
    %314 = vmatmul.f32.gmra.mxu0 %v52
    %v315 = vpop.f32.mrf.mxu0
    %v316 = vadd.f32 0.0, %v315
    %317 = vmatmul.f32.gmra.mxu0 %v55
    %v318 = vpop.f32.mrf.mxu0
    %v319 = vadd.f32 0.0, %v318
    %320 = vmatmul.f32.gmra.mxu0 %v58
    %v321 = vpop.f32.mrf.mxu0
    %v322 = vadd.f32 0.0, %v321
    %323 = vmatmul.f32.gmra.mxu0 %v61
    %v324 = vpop.f32.mrf.mxu0
    %v325 = vadd.f32 0.0, %v324
    %326 = vmatmul.f32.gmra.mxu0 %v64
    %v327 = vpop.f32.mrf.mxu0
    %v328 = vadd.f32 0.0, %v327
    %329 = vmatmul.f32.gmra.mxu0 %v67
    %v330 = vpop.f32.mrf.mxu0
    %v331 = vadd.f32 0.0, %v330
    %332 = vmatmul.f32.gmra.mxu0 %v70
    %v333 = vpop.f32.mrf.mxu0
    %v334 = vadd.f32 0.0, %v333
    %335 = vmatmul.f32.gmra.mxu0 %v73
    %v336 = vpop.f32.mrf.mxu0
    %v337 = vadd.f32 0.0, %v336
    %338 = vmatmul.f32.gmra.mxu0 %v76
    %v339 = vpop.f32.mrf.mxu0
    %v340 = vadd.f32 0.0, %v339
    %341 = vmatmul.f32.gmra.mxu0 %v79
    %v342 = vpop.f32.mrf.mxu0
    %v343 = vadd.f32 0.0, %v342
    %344 = vmatmul.f32.gmra.mxu0 %v82
    %v345 = vpop.f32.mrf.mxu0
    %v346 = vadd.f32 0.0, %v345
    %347 = vmatmul.f32.gmra.mxu0 %v85
    %v348 = vpop.f32.mrf.mxu0
    %v349 = vadd.f32 0.0, %v348
    %350 = vmatmul.f32.gmra.mxu0 %v88
    %v351 = vpop.f32.mrf.mxu0
    %v352 = vadd.f32 0.0, %v351
    %353 = vmatmul.f32.gmra.mxu0 %v91
    %v354 = vpop.f32.mrf.mxu0
    %v355 = vadd.f32 0.0, %v354
    %356 = vdwg.mxu0
    %357 = vmatpush.msra.mxu0 %v270
    %358 = vmatpush.msra.mxu0 %v269
    %359 = vmatpush.msra.mxu0 %v268
    %360 = vmatpush.msra.mxu0 %v267
    %361 = vmatpush.msra.mxu0 %v266
    %362 = vmatpush.msra.mxu0 %v265
    %363 = vmatpush.msra.mxu0 %v264
    %364 = vmatpush.msra.mxu0 %v263
    %365 = vmatpush.msra.mxu0 %v262
    %366 = vmatpush.msra.mxu0 %v261
    %367 = vmatpush.msra.mxu0 %v260
    %368 = vmatpush.msra.mxu0 %v259
    %369 = vmatpush.msra.mxu0 %v258
    %370 = vmatpush.msra.mxu0 %v257
    %371 = vmatpush.msra.mxu0 %v256
    %372 = vmatpush.msra.mxu0 %v255
    %373 = vmatmul.f32.gmra.mxu0 %v223
    %v374 = vpop.f32.mrf.mxu0
    %v375 = vadd.f32 %v310, %v374
    %376 = vmatmul.f32.gmra.mxu0 %v225
    %v377 = vpop.f32.mrf.mxu0
    %v378 = vadd.f32 %v313, %v377
    %379 = vmatmul.f32.gmra.mxu0 %v227
    %v380 = vpop.f32.mrf.mxu0
    %v381 = vadd.f32 %v316, %v380
    %382 = vmatmul.f32.gmra.mxu0 %v229
    %v383 = vpop.f32.mrf.mxu0
    %v384 = vadd.f32 %v319, %v383
    %385 = vmatmul.f32.gmra.mxu0 %v231
    %v386 = vpop.f32.mrf.mxu0
    %v387 = vadd.f32 %v322, %v386
    %388 = vmatmul.f32.gmra.mxu0 %v233
    %v389 = vpop.f32.mrf.mxu0
    %v390 = vadd.f32 %v325, %v389
    %391 = vmatmul.f32.gmra.mxu0 %v235
    %v392 = vpop.f32.mrf.mxu0
    %v393 = vadd.f32 %v328, %v392
    %394 = vmatmul.f32.gmra.mxu0 %v237
    %v395 = vpop.f32.mrf.mxu0
    %v396 = vadd.f32 %v331, %v395
    %397 = vmatmul.f32.gmra.mxu0 %v239
    %v398 = vpop.f32.mrf.mxu0
    %v399 = vadd.f32 %v334, %v398
    %400 = vmatmul.f32.gmra.mxu0 %v241
    %v401 = vpop.f32.mrf.mxu0
    %v402 = vadd.f32 %v337, %v401
    %403 = vmatmul.f32.gmra.mxu0 %v243
    %v404 = vpop.f32.mrf.mxu0
    %v405 = vadd.f32 %v340, %v404
    %406 = vmatmul.f32.gmra.mxu0 %v245
    %v407 = vpop.f32.mrf.mxu0
    %v408 = vadd.f32 %v343, %v407
    %409 = vmatmul.f32.gmra.mxu0 %v247
    %v410 = vpop.f32.mrf.mxu0
    %v411 = vadd.f32 %v346, %v410
    %412 = vmatmul.f32.gmra.mxu0 %v249
    %v413 = vpop.f32.mrf.mxu0
    %v414 = vadd.f32 %v349, %v413
    %415 = vmatmul.f32.gmra.mxu0 %v251
    %v416 = vpop.f32.mrf.mxu0
    %v417 = vadd.f32 %v352, %v416
    %418 = vmatmul.f32.gmra.mxu0 %v253
    %v419 = vpop.f32.mrf.mxu0
    %v420 = vadd.f32 %v355, %v419
    %421 = vdwg.mxu0
    %422 = vmatpush.msra.mxu0 %v286
    %423 = vmatpush.msra.mxu0 %v285
    %424 = vmatpush.msra.mxu0 %v284
    %425 = vmatpush.msra.mxu0 %v283
    %426 = vmatpush.msra.mxu0 %v282
    %427 = vmatpush.msra.mxu0 %v281
    %428 = vmatpush.msra.mxu0 %v280
    %429 = vmatpush.msra.mxu0 %v279
    %430 = vmatpush.msra.mxu0 %v278
    %431 = vmatpush.msra.mxu0 %v277
    %432 = vmatpush.msra.mxu0 %v276
    %433 = vmatpush.msra.mxu0 %v275
    %434 = vmatpush.msra.mxu0 %v274
    %435 = vmatpush.msra.mxu0 %v273
    %436 = vmatpush.msra.mxu0 %v272
    %437 = vmatpush.msra.mxu0 %v271
    %438 = vmatmul.f32.gmra.mxu0 %v224
    %v439 = vpop.f32.mrf.mxu0
    %v440 = vadd.f32 %v375, %v439
    %441 = vmatmul.f32.gmra.mxu0 %v226
    %v442 = vpop.f32.mrf.mxu0
    %v443 = vadd.f32 %v378, %v442
    %444 = vmatmul.f32.gmra.mxu0 %v228
    %v445 = vpop.f32.mrf.mxu0
    %v446 = vadd.f32 %v381, %v445
    %447 = vmatmul.f32.gmra.mxu0 %v230
    %v448 = vpop.f32.mrf.mxu0
    %v449 = vadd.f32 %v384, %v448
    %450 = vmatmul.f32.gmra.mxu0 %v232
    %v451 = vpop.f32.mrf.mxu0
    %v452 = vadd.f32 %v387, %v451
    %453 = vmatmul.f32.gmra.mxu0 %v234
    %v454 = vpop.f32.mrf.mxu0
    %v455 = vadd.f32 %v390, %v454
    %456 = vmatmul.f32.gmra.mxu0 %v236
    %v457 = vpop.f32.mrf.mxu0
    %v458 = vadd.f32 %v393, %v457
    %459 = vmatmul.f32.gmra.mxu0 %v238
    %v460 = vpop.f32.mrf.mxu0
    %v461 = vadd.f32 %v396, %v460
    %462 = vmatmul.f32.gmra.mxu0 %v240
    %v463 = vpop.f32.mrf.mxu0
    %v464 = vadd.f32 %v399, %v463
    %465 = vmatmul.f32.gmra.mxu0 %v242
    %v466 = vpop.f32.mrf.mxu0
    %v467 = vadd.f32 %v402, %v466
    %468 = vmatmul.f32.gmra.mxu0 %v244
    %v469 = vpop.f32.mrf.mxu0
    %v470 = vadd.f32 %v405, %v469
    %471 = vmatmul.f32.gmra.mxu0 %v246
    %v472 = vpop.f32.mrf.mxu0
    %v473 = vadd.f32 %v408, %v472
    %474 = vmatmul.f32.gmra.mxu0 %v248
    %v475 = vpop.f32.mrf.mxu0
    %v476 = vadd.f32 %v411, %v475
    %477 = vmatmul.f32.gmra.mxu0 %v250
    %v478 = vpop.f32.mrf.mxu0
    %v479 = vadd.f32 %v414, %v478
    %480 = vmatmul.f32.gmra.mxu0 %v252
    %v481 = vpop.f32.mrf.mxu0
    %v482 = vadd.f32 %v417, %v481
    %483 = vmatmul.f32.gmra.mxu0 %v254
    %v484 = vpop.f32.mrf.mxu0
    %v485 = vadd.f32 %v420, %v484
    %486 = vdwg.mxu0
    %v487 = vmax.f32 %v440, 0.0
    %v488 = vmax.f32 %v443, 0.0
    %v489 = vmax.f32 %v446, 0.0
    %v490 = vmax.f32 %v449, 0.0
    %v491 = vmax.f32 %v452, 0.0
    %v492 = vmax.f32 %v455, 0.0
    %v493 = vmax.f32 %v458, 0.0
    %v494 = vmax.f32 %v461, 0.0
    %v495 = vmax.f32 %v464, 0.0
    %v496 = vmax.f32 %v467, 0.0
    %v497 = vmax.f32 %v470, 0.0
    %v498 = vmax.f32 %v473, 0.0
    %v499 = vmax.f32 %v476, 0.0
    %v500 = vmax.f32 %v479, 0.0
    %v501 = vmax.f32 %v482, 0.0
    %v502 = vmax.f32 %v485, 0.0
    %v503 = vld [vmem:[%s3] sm:$0xff]
    %v504 = vld [vmem:[%s3 + $0x8] sm:$0xff]
    %v505 = vld [vmem:[%s3 + $0x10] sm:$0xff]
    %v506 = vld [vmem:[%s3 + $0x18] sm:$0xff]
    %v507 = vld [vmem:[%s3 + $0x20] sm:$0x1]
    %v508 = vperm.slane %v507, 0
    %vm509 = vcmask 261120
    %v511 = vsel %vm509, %v487, 0
    %v514 = vsel %vm509, %v488, 0
    %v517 = vsel %vm509, %v489, 0
    %v520 = vsel %vm509, %v490, 0
    %v523 = vsel %vm509, %v491, 0
    %v526 = vsel %vm509, %v492, 0
    %v529 = vsel %vm509, %v493, 0
    %v532 = vsel %vm509, %v494, 0
    %v535 = vsel %vm509, %v495, 0
    %v538 = vsel %vm509, %v496, 0
    %v541 = vsel %vm509, %v497, 0
    %v544 = vsel %vm509, %v498, 0
    %v547 = vsel %vm509, %v499, 0
    %v550 = vsel %vm509, %v500, 0
    %v553 = vsel %vm509, %v501, 0
    %v556 = vsel %vm509, %v502, 0
    %558 = vmatpush.msra.mxu0 0.0
    %559 = vmatpush.msra.mxu0 0.0
    %560 = vmatpush.msra.mxu0 0.0
    %561 = vmatpush.msra.mxu0 0.0
    %562 = vmatpush.msra.mxu0 0.0
    %563 = vmatpush.msra.mxu0 0.0
    %564 = vmatpush.msra.mxu0 0.0
    %565 = vmatpush.msra.mxu0 0.0
    %566 = vmatpush.msra.mxu0 0.0
    %567 = vmatpush.msra.mxu0 0.0
    %568 = vmatpush.msra.mxu0 0.0
    %569 = vmatpush.msra.mxu0 0.0
    %570 = vmatpush.msra.mxu0 %v506
    %571 = vmatpush.msra.mxu0 %v505
    %572 = vmatpush.msra.mxu0 %v504
    %573 = vmatpush.msra.mxu0 %v503
    %574 = vmatmul.f32.gmra.mxu0 %v511
    %v575 = vpop.f32.mrf.mxu0
    %v576 = vadd.f32 %v508, %v575
    %577 = vmatmul.f32.gmra.mxu0 %v514
    %v578 = vpop.f32.mrf.mxu0
    %v579 = vadd.f32 %v508, %v578
    %580 = vmatmul.f32.gmra.mxu0 %v517
    %v581 = vpop.f32.mrf.mxu0
    %v582 = vadd.f32 %v508, %v581
    %583 = vmatmul.f32.gmra.mxu0 %v520
    %v584 = vpop.f32.mrf.mxu0
    %v585 = vadd.f32 %v508, %v584
    %586 = vmatmul.f32.gmra.mxu0 %v523
    %v587 = vpop.f32.mrf.mxu0
    %v588 = vadd.f32 %v508, %v587
    %589 = vmatmul.f32.gmra.mxu0 %v526
    %v590 = vpop.f32.mrf.mxu0
    %v591 = vadd.f32 %v508, %v590
    %592 = vmatmul.f32.gmra.mxu0 %v529
    %v593 = vpop.f32.mrf.mxu0
    %v594 = vadd.f32 %v508, %v593
    %595 = vmatmul.f32.gmra.mxu0 %v532
    %v596 = vpop.f32.mrf.mxu0
    %v597 = vadd.f32 %v508, %v596
    %598 = vmatmul.f32.gmra.mxu0 %v535
    %v599 = vpop.f32.mrf.mxu0
    %v600 = vadd.f32 %v508, %v599
    %601 = vmatmul.f32.gmra.mxu0 %v538
    %v602 = vpop.f32.mrf.mxu0
    %v603 = vadd.f32 %v508, %v602
    %604 = vmatmul.f32.gmra.mxu0 %v541
    %v605 = vpop.f32.mrf.mxu0
    %v606 = vadd.f32 %v508, %v605
    %607 = vmatmul.f32.gmra.mxu0 %v544
    %v608 = vpop.f32.mrf.mxu0
    %v609 = vadd.f32 %v508, %v608
    %610 = vmatmul.f32.gmra.mxu0 %v547
    %v611 = vpop.f32.mrf.mxu0
    %v612 = vadd.f32 %v508, %v611
    %613 = vmatmul.f32.gmra.mxu0 %v550
    %v614 = vpop.f32.mrf.mxu0
    %v615 = vadd.f32 %v508, %v614
    %616 = vmatmul.f32.gmra.mxu0 %v553
    %v617 = vpop.f32.mrf.mxu0
    %v618 = vadd.f32 %v508, %v617
    %619 = vmatmul.f32.gmra.mxu0 %v556
    %v620 = vpop.f32.mrf.mxu0
    %v621 = vadd.f32 %v508, %v620
    %622 = vdwg.mxu0
    %623 = vst [vmem:[#allocation2] sm:$0xff] %v576
    %624 = vst [vmem:[#allocation2 + $0x8] sm:$0xff] %v579
    %625 = vst [vmem:[#allocation2 + $0x10] sm:$0xff] %v582
    %626 = vst [vmem:[#allocation2 + $0x18] sm:$0xff] %v585
    %627 = vst [vmem:[#allocation2 + $0x20] sm:$0xff] %v588
    %628 = vst [vmem:[#allocation2 + $0x28] sm:$0xff] %v591
    %629 = vst [vmem:[#allocation2 + $0x30] sm:$0xff] %v594
    %630 = vst [vmem:[#allocation2 + $0x38] sm:$0xff] %v597
    %631 = vst [vmem:[#allocation2 + $0x40] sm:$0xff] %v600
    %632 = vst [vmem:[#allocation2 + $0x48] sm:$0xff] %v603
    %633 = vst [vmem:[#allocation2 + $0x50] sm:$0xff] %v606
    %634 = vst [vmem:[#allocation2 + $0x58] sm:$0xff] %v609
    %635 = vst [vmem:[#allocation2 + $0x60] sm:$0xff] %v612
    %636 = vst [vmem:[#allocation2 + $0x68] sm:$0xff] %v615
    %637 = vst [vmem:[#allocation2 + $0x70] sm:$0xff] %v618
    %638 = vst [vmem:[#allocation2 + $0x78] sm:$0xff] %v621
    // Predicated region
    $region18: #{tpu_custom_call.1} parent=1 // pred_check
      _
    $region19: #{tpu_custom_call.1} parent=1 // pred_check_branch
      %640 = sbr.rel (0) target = $region21
    $region20: #{tpu_custom_call.1} parent=1 // pred_region
      %642 = vsyncadd [#allocation3], 0
      %s643 = sshll.u32 [#allocation2], 4
      %s644 = int_to_ptr.vmem [resolvable:$true] %s643
      %s645 = sshll.u32 %s4, 4
      %s646 = int_to_ptr.hbm [resolvable:$true] %s645
      %651 = dma.vmem_to_hbm [thread:$0]  %s644, 2048, %s646, [#allocation3], 128, 128, 8
    $region21: #{tpu_custom_call.1} parent=1 // pred_fallthru
      _
    // Predicated region
    $region22: #{tpu_custom_call.1} parent=1 // pred_check
      _
    $region23: #{tpu_custom_call.1} parent=1 // pred_check_branch
      %653 = sbr.rel (0) target = $region25
    $region24: #{tpu_custom_call.1} parent=1 // pred_region
      %655 = dma.done [#allocation3], 2048
    $region25: #{tpu_custom_call.1} parent=1 // pred_fallthru
      _
    %656 = vsyncpa [#allocation3], 1

</llo_original>
